<compile_context>
chip_gen: v6e
topology: v6e:2x2x1
jax: 0.10.0
libtpu: 0.0.40
codegen_flags: <defaults>
</compile_context>

<pallas_src>
import functools

import jax
import jax.numpy as jnp
from jax.experimental import pallas as pl
from jax.experimental.pallas import tpu as pltpu


# ----------------------------- Pallas kernel --------------------------------
def _spatial_attn_kernel(g_ref, x_ref, wq_ref, wk_ref, bqk_ref, wa_ref, ba_ref,
                         o_ref, *, ci, cg, cf):
    # g_ref  : (Cg, S_tile, 128)  VMEM   gating-signal planes (channels-first)
    # x_ref  : (Cf, S_tile, 128)  VMEM   feature-map planes
    # wq_ref : (Ci, Cg)           SMEM   BN-folded query conv weights
    # wk_ref : (Ci, Cf)           SMEM   BN-folded key   conv weights
    # bqk_ref: (Ci,)              SMEM   combined (bq + bk) BN-folded bias
    # wa_ref : (Ci,)              SMEM   BN-folded attention conv weights
    # ba_ref : (1,)               SMEM   BN-folded attention bias
    # o_ref  : (Cf, S_tile, 128)  VMEM
    #
    # TODO(synk): for bf16 inputs on v6e/v7x, keep the FMAs in bf16 (bf16 VALU)
    # and cast only the logit to f32 before the sigmoid; v5e must stay f32.
    gf = g_ref[...].astype(jnp.float32)          # (Cg, S, 128)
    xf = x_ref[...].astype(jnp.float32)          # (Cf, S, 128)

    # attention logit = ba + sum_i wa[i] * relu( Wq[i,:]@g + Wk[i,:]@x + b[i] )
    # Unrolled VPU FMAs on full (S,128) planes (channel counts are tiny).
    # TODO(synk): for large channel counts (Ci*(Cg+Cf) >~ 1024) switch to an
    # MXU matmul path with VMEM-resident weights instead of this scalar unroll.
    logit = None
    for i in range(ci):
        e = gf[0] * wq_ref[i, 0]
        for c in range(1, cg):
            e = e + gf[c] * wq_ref[i, c]
        for c in range(cf):
            e = e + xf[c] * wk_ref[i, c]
        e = jnp.maximum(e + bqk_ref[i], 0.0)     # ReLU(q + k), (S, 128)
        term = e * wa_ref[i]
        logit = term if logit is None else logit + term

    attn = jax.nn.sigmoid(logit + ba_ref[0])     # (S, 128)  EUP sigmoid
    # gating: broadcast over channels, full-vreg multiply, lane-dense store
    o_ref[...] = (xf * attn[None, :, :]).astype(o_ref.dtype)


# ----------------------------- tiling helpers --------------------------------
def _choose_s_tile(S, bytes_per_row, *, target_block_bytes=4 << 20, max_rows=512):
    """Sublane-row tile: full S if it fits, else a multiple-of-8 row count that
    keeps one block of live data around ~target_block_bytes (amortizes the
    ~0.35us/step overhead while staying well inside scoped VMEM)."""
    cap = min(max_rows, max(8, target_block_bytes // max(bytes_per_row, 1)))
    cap = max(8, (cap // 8) * 8)
    if S <= cap:
        return S                      # block == full dim is always legal
    return cap                        # multiple of 8; partial last block is OK


def _spatial_attention_cf(g3, x3, wq, wk, bqk, wa, ba):
    """g3: (B, Cg, HW), x3: (B, Cf, HW) channels-first.  Returns (B, Cf, HW)."""
    B, Cg, HW = g3.shape
    _, Cf, _ = x3.shape
    Ci = wq.shape[0]
    itemsize = jnp.dtype(x3.dtype).itemsize

    # --- make the spatial axis sublane-dense: (B, C, HW) -> (B, C, S, 128) ---
    HW_pad = ((HW + 127) // 128) * 128
    if HW_pad != HW:
        # TODO(synk): a masked-tail in-kernel path would avoid this HBM copy;
        # pad is only to the next 128 multiple (ragged HW is a rare case).
        g3 = jnp.pad(g3, ((0, 0), (0, 0), (0, HW_pad - HW)))
        x3 = jnp.pad(x3, ((0, 0), (0, 0), (0, HW_pad - HW)))
    S = HW_pad // 128
    g4 = g3.reshape(B, Cg, S, 128)       # zero-copy (row-major)
    x4 = x3.reshape(B, Cf, S, 128)

    bytes_per_row = (Cg + 2 * Cf) * 128 * itemsize
    s_tile = _choose_s_tile(S, bytes_per_row)

    # v7x megacore: make sure both TensorCores get at least one grid step.
    if B * pl.cdiv(S, s_tile) < 2 and S >= 16:
        s_tile = (((S + 1) // 2) + 7) // 8 * 8

    grid = (B, pl.cdiv(S, s_tile))
    # TODO(synk): for small-HW / large-B regimes, block several batch elements
    # per grid step (block (Bt, C, S, 128)) to amortize per-step overhead.

    # explicit scoped-VMEM budget derived from the chosen tile
    block_bytes = (Cg + 2 * Cf) * s_tile * 128 * itemsize          # in + out
    f32_temp_bytes = (Cg + Cf + 2) * s_tile * 128 * 4              # kernel temps
    vmem_limit = int(min(96 << 20, max(16 << 20,
                                       2 * block_bytes + f32_temp_bytes + (4 << 20))))

    # advisory cost for XLA scheduling (memory-bound elementwise kernel)
    cost = pl.CostEstimate(
        flops=int(B * HW * (2 * Ci * (Cg + Cf + 2) + 2 * Cf)),
        transcendentals=int(B * HW),
        bytes_accessed=int((Cg + 2 * Cf) * B * HW * itemsize),
    )

    kernel = functools.partial(_spatial_attn_kernel, ci=Ci, cg=Cg, cf=Cf)
    smem = pl.BlockSpec(memory_space=pltpu.MemorySpace.SMEM)

    out4 = pl.pallas_call(
        kernel,
        out_shape=jax.ShapeDtypeStruct((B, Cf, S, 128), x4.dtype),
        grid_spec=pltpu.PrefetchScalarGridSpec(
            num_scalar_prefetch=0,
            grid=grid,
            in_specs=[
                pl.BlockSpec((None, Cg, s_tile, 128), lambda b, s: (b, 0, s, 0)),
                pl.BlockSpec((None, Cf, s_tile, 128), lambda b, s: (b, 0, s, 0)),
                smem, smem, smem, smem, smem,                      # folded weights
            ],
            out_specs=pl.BlockSpec((None, Cf, s_tile, 128),
                                   lambda b, s: (b, 0, s, 0)),
        ),
        compiler_params=pltpu.CompilerParams(
            dimension_semantics=("parallel", "parallel"),
            vmem_limit_bytes=vmem_limit),
        cost_estimate=cost,
    )(g4, x4, wq, wk, bqk, wa, ba)

    out3 = out4.reshape(B, Cf, HW_pad)
    if HW_pad != HW:
        out3 = out3[:, :, :HW]
    return out3


# ------------------------------ module glue ---------------------------------
def _fold_bn(w, b, gamma, beta, mean, var, eps=1e-5):
    """Fold BatchNorm (eval mode) into a 1x1 conv.  w: (Cout, Cin), b: (Cout,)."""
    scale = gamma / jnp.sqrt(var + eps)                 # (Cout,)
    w_eff = w * scale[:, None]                          # (Cout, Cin)
    b_eff = (b - mean) * scale + beta                   # (Cout,)
    return w_eff, b_eff


def init_spatial_attention_params(key, gating_channels, feature_channels,
                                  inter_channels=None):
    ci = inter_channels or feature_channels // 2
    ks = jax.random.split(key, 6)
    p = {}
    # conv weights (Cout, Cin) for 1x1 convs; deterministic small normals
    p["wq"] = 0.1 * jax.random.normal(ks[0], (ci, gating_channels), jnp.float32)
    p["bq"] = 0.1 * jax.random.normal(ks[1], (ci,), jnp.float32)
    p["wk"] = 0.1 * jax.random.normal(ks[2], (ci, feature_channels), jnp.float32)
    p["bk"] = 0.1 * jax.random.normal(ks[3], (ci,), jnp.float32)
    p["wa"] = 0.1 * jax.random.normal(ks[4], (1, ci), jnp.float32)
    p["ba"] = 0.1 * jax.random.normal(ks[5], (1,), jnp.float32)
    # BatchNorm params at PyTorch defaults (gamma=1, beta=0, mean=0, var=1)
    for name, c in (("q", ci), ("k", ci), ("a", 1)):
        p[f"bn_{name}_gamma"] = jnp.ones((c,), jnp.float32)
        p[f"bn_{name}_beta"] = jnp.zeros((c,), jnp.float32)
        p[f"bn_{name}_mean"] = jnp.zeros((c,), jnp.float32)
        p[f"bn_{name}_var"] = jnp.ones((c,), jnp.float32)
    return p


@jax.jit
def spatial_attention_forward(params, g, x):
    """g: (B, Cg, H, W), x: (B, Cf, H, W)  (NCHW, like the PyTorch module)."""
    B, Cg, H, W = g.shape
    _, Cf, _, _ = x.shape

    # fold BN (eval semantics) into the 1x1 convs; combine the q/k biases
    wq, bq = _fold_bn(params["wq"], params["bq"], params["bn_q_gamma"],
                      params["bn_q_beta"], params["bn_q_mean"], params["bn_q_var"])
    wk, bk = _fold_bn(params["wk"], params["bk"], params["bn_k_gamma"],
                      params["bn_k_beta"], params["bn_k_mean"], params["bn_k_var"])
    wa, ba = _fold_bn(params["wa"], params["ba"], params["bn_a_gamma"],
                      params["bn_a_beta"], params["bn_a_mean"], params["bn_a_var"])
    bqk = (bq + bk).astype(jnp.float32)                  # (Ci,)

    # NCHW -> (B, C, H*W): pure reshape, no transpose, no dtype change
    g3 = g.reshape(B, Cg, H * W)
    x3 = x.reshape(B, Cf, H * W)

    out3 = _spatial_attention_cf(
        g3, x3,
        wq.astype(jnp.float32), wk.astype(jnp.float32), bqk,
        wa.reshape(-1).astype(jnp.float32), ba.reshape(-1).astype(jnp.float32),
    )
    return out3.reshape(B, Cf, H, W)


def _reference_forward(params, g, x):
    """Pure-JAX reference (matches PyTorch eval-mode forward, exact f32)."""
    hi = jax.lax.Precision.HIGHEST

    def conv1x1_bn(inp, w, b, gm, bt, mu, vr):
        y = jnp.einsum("bchw,oc->bohw", inp, w, precision=hi) \
            + b[None, :, None, None]
        scale = gm / jnp.sqrt(vr + 1e-5)
        return (y - mu[None, :, None, None]) * scale[None, :, None, None] \
            + bt[None, :, None, None]

    q = conv1x1_bn(g, params["wq"], params["bq"], params["bn_q_gamma"],
                   params["bn_q_beta"], params["bn_q_mean"], params["bn_q_var"])
    k = conv1x1_bn(x, params["wk"], params["bk"], params["bn_k_gamma"],
                   params["bn_k_beta"], params["bn_k_mean"], params["bn_k_var"])
    e = jnp.maximum(q + k, 0.0)
    a = conv1x1_bn(e, params["wa"], params["ba"], params["bn_a_gamma"],
                   params["bn_a_beta"], params["bn_a_mean"], params["bn_a_var"])
    a = jax.nn.sigmoid(a)
    return x * a


if __name__ == "__main__":
    key = jax.random.PRNGKey(0)
    kp, kg, kx = jax.random.split(key, 3)

    B, Cg, Cf, H, W = 2, 4, 4, 16, 16       # inter_channels = Cf // 2 = 2
    params = init_spatial_attention_params(kp, Cg, Cf)

    g = jax.random.normal(kg, (B, Cg, H, W), jnp.float32)
    x = jax.random.normal(kx, (B, Cf, H, W), jnp.float32)

    out = spatial_attention_forward(params, g, x)
    out = jax.block_until_ready(out)

    ref = _reference_forward(params, g, x)
    assert out.shape == (B, Cf, H, W)
    assert out.dtype == x.dtype
    assert jnp.allclose(out, ref, atol=1e-5, rtol=1e-5), "mismatch vs reference"

    print("KERNEL_OK")
</pallas_src>

<mosaic_0001>
module attributes {stable_mosaic.version = 11 : i64} {
  func.func @_spatial_attn_kernel(%arg0: i32, %arg1: i32, %arg2: memref<1x4x2x128xf32, #tpu.memory_space<vmem>>, %arg3: memref<1x4x2x128xf32, #tpu.memory_space<vmem>>, %arg4: memref<2x4xf32, #tpu.memory_space<smem>>, %arg5: memref<2x4xf32, #tpu.memory_space<smem>>, %arg6: memref<2xf32, #tpu.memory_space<smem>>, %arg7: memref<2xf32, #tpu.memory_space<smem>>, %arg8: memref<1xf32, #tpu.memory_space<smem>>, %arg9: memref<1x4x2x128xf32, #tpu.memory_space<vmem>>) attributes {dimension_semantics = [#tpu.dimension_semantics<parallel>, #tpu.dimension_semantics<parallel>], iteration_bounds = array<i64: 2, 1>, scalar_prefetch = 0 : i64, scratch_operands = 0 : i64, tpu.core_type = #tpu.core_type<tc>, window_params = [{transform_indices = @transform_0, window_bounds = array<i64: 1, 4, 2, 128>}, {transform_indices = @transform_1, window_bounds = array<i64: 1, 4, 2, 128>}, {transform_indices = @transform_2, window_bounds = array<i64: 2, 4>}, {transform_indices = @transform_3, window_bounds = array<i64: 2, 4>}, {transform_indices = @transform_4, window_bounds = array<i64: 2>}, {transform_indices = @transform_5, window_bounds = array<i64: 2>}, {transform_indices = @transform_6, window_bounds = array<i64: 1>}, {transform_indices = @transform_7, window_bounds = array<i64: 1, 4, 2, 128>}]} {
    %c0 = arith.constant 0 : index
    %c0_0 = arith.constant 0 : index
    %c0_1 = arith.constant 0 : index
    %c0_2 = arith.constant 0 : index
    %0 = vector.load %arg2[%c0, %c0_0, %c0_1, %c0_2] : memref<1x4x2x128xf32, #tpu.memory_space<vmem>>, vector<1x4x2x128xf32>
    %1 = vector.shape_cast %0 : vector<1x4x2x128xf32> to vector<4x2x128xf32>
    %c0_3 = arith.constant 0 : index
    %c0_4 = arith.constant 0 : index
    %c0_5 = arith.constant 0 : index
    %c0_6 = arith.constant 0 : index
    %2 = vector.load %arg3[%c0_3, %c0_4, %c0_5, %c0_6] : memref<1x4x2x128xf32, #tpu.memory_space<vmem>>, vector<1x4x2x128xf32>
    %3 = vector.shape_cast %2 : vector<1x4x2x128xf32> to vector<4x2x128xf32>
    %4 = vector.extract_strided_slice %1 {offsets = [0, 0, 0], sizes = [1, 2, 128], strides = [1, 1, 1]} : vector<4x2x128xf32> to vector<1x2x128xf32>
    %5 = vector.shape_cast %4 : vector<1x2x128xf32> to vector<2x128xf32>
    %c0_7 = arith.constant 0 : index
    %c0_8 = arith.constant 0 : index
    %6 = memref.load %arg4[%c0_7, %c0_8] : memref<2x4xf32, #tpu.memory_space<smem>>
    %7 = vector.broadcast %6 : f32 to vector<2x128xf32>
    %8 = arith.mulf %5, %7 : vector<2x128xf32>
    %9 = vector.extract_strided_slice %1 {offsets = [1, 0, 0], sizes = [1, 2, 128], strides = [1, 1, 1]} : vector<4x2x128xf32> to vector<1x2x128xf32>
    %10 = vector.shape_cast %9 : vector<1x2x128xf32> to vector<2x128xf32>
    %c0_9 = arith.constant 0 : index
    %c1 = arith.constant 1 : index
    %11 = memref.load %arg4[%c0_9, %c1] : memref<2x4xf32, #tpu.memory_space<smem>>
    %12 = vector.broadcast %11 : f32 to vector<2x128xf32>
    %13 = arith.mulf %10, %12 : vector<2x128xf32>
    %14 = arith.addf %8, %13 : vector<2x128xf32>
    %15 = vector.extract_strided_slice %1 {offsets = [2, 0, 0], sizes = [1, 2, 128], strides = [1, 1, 1]} : vector<4x2x128xf32> to vector<1x2x128xf32>
    %16 = vector.shape_cast %15 : vector<1x2x128xf32> to vector<2x128xf32>
    %c0_10 = arith.constant 0 : index
    %c2 = arith.constant 2 : index
    %17 = memref.load %arg4[%c0_10, %c2] : memref<2x4xf32, #tpu.memory_space<smem>>
    %18 = vector.broadcast %17 : f32 to vector<2x128xf32>
    %19 = arith.mulf %16, %18 : vector<2x128xf32>
    %20 = arith.addf %14, %19 : vector<2x128xf32>
    %21 = vector.extract_strided_slice %1 {offsets = [3, 0, 0], sizes = [1, 2, 128], strides = [1, 1, 1]} : vector<4x2x128xf32> to vector<1x2x128xf32>
    %22 = vector.shape_cast %21 : vector<1x2x128xf32> to vector<2x128xf32>
    %c0_11 = arith.constant 0 : index
    %c3 = arith.constant 3 : index
    %23 = memref.load %arg4[%c0_11, %c3] : memref<2x4xf32, #tpu.memory_space<smem>>
    %24 = vector.broadcast %23 : f32 to vector<2x128xf32>
    %25 = arith.mulf %22, %24 : vector<2x128xf32>
    %26 = arith.addf %20, %25 : vector<2x128xf32>
    %27 = vector.extract_strided_slice %3 {offsets = [0, 0, 0], sizes = [1, 2, 128], strides = [1, 1, 1]} : vector<4x2x128xf32> to vector<1x2x128xf32>
    %28 = vector.shape_cast %27 : vector<1x2x128xf32> to vector<2x128xf32>
    %c0_12 = arith.constant 0 : index
    %c0_13 = arith.constant 0 : index
    %29 = memref.load %arg5[%c0_12, %c0_13] : memref<2x4xf32, #tpu.memory_space<smem>>
    %30 = vector.broadcast %29 : f32 to vector<2x128xf32>
    %31 = arith.mulf %28, %30 : vector<2x128xf32>
    %32 = arith.addf %26, %31 : vector<2x128xf32>
    %33 = vector.extract_strided_slice %3 {offsets = [1, 0, 0], sizes = [1, 2, 128], strides = [1, 1, 1]} : vector<4x2x128xf32> to vector<1x2x128xf32>
    %34 = vector.shape_cast %33 : vector<1x2x128xf32> to vector<2x128xf32>
    %c0_14 = arith.constant 0 : index
    %c1_15 = arith.constant 1 : index
    %35 = memref.load %arg5[%c0_14, %c1_15] : memref<2x4xf32, #tpu.memory_space<smem>>
    %36 = vector.broadcast %35 : f32 to vector<2x128xf32>
    %37 = arith.mulf %34, %36 : vector<2x128xf32>
    %38 = arith.addf %32, %37 : vector<2x128xf32>
    %39 = vector.extract_strided_slice %3 {offsets = [2, 0, 0], sizes = [1, 2, 128], strides = [1, 1, 1]} : vector<4x2x128xf32> to vector<1x2x128xf32>
    %40 = vector.shape_cast %39 : vector<1x2x128xf32> to vector<2x128xf32>
    %c0_16 = arith.constant 0 : index
    %c2_17 = arith.constant 2 : index
    %41 = memref.load %arg5[%c0_16, %c2_17] : memref<2x4xf32, #tpu.memory_space<smem>>
    %42 = vector.broadcast %41 : f32 to vector<2x128xf32>
    %43 = arith.mulf %40, %42 : vector<2x128xf32>
    %44 = arith.addf %38, %43 : vector<2x128xf32>
    %45 = vector.extract_strided_slice %3 {offsets = [3, 0, 0], sizes = [1, 2, 128], strides = [1, 1, 1]} : vector<4x2x128xf32> to vector<1x2x128xf32>
    %46 = vector.shape_cast %45 : vector<1x2x128xf32> to vector<2x128xf32>
    %c0_18 = arith.constant 0 : index
    %c3_19 = arith.constant 3 : index
    %47 = memref.load %arg5[%c0_18, %c3_19] : memref<2x4xf32, #tpu.memory_space<smem>>
    %48 = vector.broadcast %47 : f32 to vector<2x128xf32>
    %49 = arith.mulf %46, %48 : vector<2x128xf32>
    %50 = arith.addf %44, %49 : vector<2x128xf32>
    %c0_20 = arith.constant 0 : index
    %51 = memref.load %arg6[%c0_20] : memref<2xf32, #tpu.memory_space<smem>>
    %52 = vector.broadcast %51 : f32 to vector<2x128xf32>
    %53 = arith.addf %50, %52 : vector<2x128xf32>
    %cst = arith.constant 0.000000e+00 : f32
    %54 = vector.broadcast %cst : f32 to vector<2x128xf32>
    %55 = arith.maximumf %53, %54 : vector<2x128xf32>
    %c0_21 = arith.constant 0 : index
    %56 = memref.load %arg7[%c0_21] : memref<2xf32, #tpu.memory_space<smem>>
    %57 = vector.broadcast %56 : f32 to vector<2x128xf32>
    %58 = arith.mulf %55, %57 : vector<2x128xf32>
    %59 = vector.extract_strided_slice %1 {offsets = [0, 0, 0], sizes = [1, 2, 128], strides = [1, 1, 1]} : vector<4x2x128xf32> to vector<1x2x128xf32>
    %60 = vector.shape_cast %59 : vector<1x2x128xf32> to vector<2x128xf32>
    %c1_22 = arith.constant 1 : index
    %c0_23 = arith.constant 0 : index
    %61 = memref.load %arg4[%c1_22, %c0_23] : memref<2x4xf32, #tpu.memory_space<smem>>
    %62 = vector.broadcast %61 : f32 to vector<2x128xf32>
    %63 = arith.mulf %60, %62 : vector<2x128xf32>
    %64 = vector.extract_strided_slice %1 {offsets = [1, 0, 0], sizes = [1, 2, 128], strides = [1, 1, 1]} : vector<4x2x128xf32> to vector<1x2x128xf32>
    %65 = vector.shape_cast %64 : vector<1x2x128xf32> to vector<2x128xf32>
    %c1_24 = arith.constant 1 : index
    %c1_25 = arith.constant 1 : index
    %66 = memref.load %arg4[%c1_24, %c1_25] : memref<2x4xf32, #tpu.memory_space<smem>>
    %67 = vector.broadcast %66 : f32 to vector<2x128xf32>
    %68 = arith.mulf %65, %67 : vector<2x128xf32>
    %69 = arith.addf %63, %68 : vector<2x128xf32>
    %70 = vector.extract_strided_slice %1 {offsets = [2, 0, 0], sizes = [1, 2, 128], strides = [1, 1, 1]} : vector<4x2x128xf32> to vector<1x2x128xf32>
    %71 = vector.shape_cast %70 : vector<1x2x128xf32> to vector<2x128xf32>
    %c1_26 = arith.constant 1 : index
    %c2_27 = arith.constant 2 : index
    %72 = memref.load %arg4[%c1_26, %c2_27] : memref<2x4xf32, #tpu.memory_space<smem>>
    %73 = vector.broadcast %72 : f32 to vector<2x128xf32>
    %74 = arith.mulf %71, %73 : vector<2x128xf32>
    %75 = arith.addf %69, %74 : vector<2x128xf32>
    %76 = vector.extract_strided_slice %1 {offsets = [3, 0, 0], sizes = [1, 2, 128], strides = [1, 1, 1]} : vector<4x2x128xf32> to vector<1x2x128xf32>
    %77 = vector.shape_cast %76 : vector<1x2x128xf32> to vector<2x128xf32>
    %c1_28 = arith.constant 1 : index
    %c3_29 = arith.constant 3 : index
    %78 = memref.load %arg4[%c1_28, %c3_29] : memref<2x4xf32, #tpu.memory_space<smem>>
    %79 = vector.broadcast %78 : f32 to vector<2x128xf32>
    %80 = arith.mulf %77, %79 : vector<2x128xf32>
    %81 = arith.addf %75, %80 : vector<2x128xf32>
    %82 = vector.extract_strided_slice %3 {offsets = [0, 0, 0], sizes = [1, 2, 128], strides = [1, 1, 1]} : vector<4x2x128xf32> to vector<1x2x128xf32>
    %83 = vector.shape_cast %82 : vector<1x2x128xf32> to vector<2x128xf32>
    %c1_30 = arith.constant 1 : index
    %c0_31 = arith.constant 0 : index
    %84 = memref.load %arg5[%c1_30, %c0_31] : memref<2x4xf32, #tpu.memory_space<smem>>
    %85 = vector.broadcast %84 : f32 to vector<2x128xf32>
    %86 = arith.mulf %83, %85 : vector<2x128xf32>
    %87 = arith.addf %81, %86 : vector<2x128xf32>
    %88 = vector.extract_strided_slice %3 {offsets = [1, 0, 0], sizes = [1, 2, 128], strides = [1, 1, 1]} : vector<4x2x128xf32> to vector<1x2x128xf32>
    %89 = vector.shape_cast %88 : vector<1x2x128xf32> to vector<2x128xf32>
    %c1_32 = arith.constant 1 : index
    %c1_33 = arith.constant 1 : index
    %90 = memref.load %arg5[%c1_32, %c1_33] : memref<2x4xf32, #tpu.memory_space<smem>>
    %91 = vector.broadcast %90 : f32 to vector<2x128xf32>
    %92 = arith.mulf %89, %91 : vector<2x128xf32>
    %93 = arith.addf %87, %92 : vector<2x128xf32>
    %94 = vector.extract_strided_slice %3 {offsets = [2, 0, 0], sizes = [1, 2, 128], strides = [1, 1, 1]} : vector<4x2x128xf32> to vector<1x2x128xf32>
    %95 = vector.shape_cast %94 : vector<1x2x128xf32> to vector<2x128xf32>
    %c1_34 = arith.constant 1 : index
    %c2_35 = arith.constant 2 : index
    %96 = memref.load %arg5[%c1_34, %c2_35] : memref<2x4xf32, #tpu.memory_space<smem>>
    %97 = vector.broadcast %96 : f32 to vector<2x128xf32>
    %98 = arith.mulf %95, %97 : vector<2x128xf32>
    %99 = arith.addf %93, %98 : vector<2x128xf32>
    %100 = vector.extract_strided_slice %3 {offsets = [3, 0, 0], sizes = [1, 2, 128], strides = [1, 1, 1]} : vector<4x2x128xf32> to vector<1x2x128xf32>
    %101 = vector.shape_cast %100 : vector<1x2x128xf32> to vector<2x128xf32>
    %c1_36 = arith.constant 1 : index
    %c3_37 = arith.constant 3 : index
    %102 = memref.load %arg5[%c1_36, %c3_37] : memref<2x4xf32, #tpu.memory_space<smem>>
    %103 = vector.broadcast %102 : f32 to vector<2x128xf32>
    %104 = arith.mulf %101, %103 : vector<2x128xf32>
    %105 = arith.addf %99, %104 : vector<2x128xf32>
    %c1_38 = arith.constant 1 : index
    %106 = memref.load %arg6[%c1_38] : memref<2xf32, #tpu.memory_space<smem>>
    %107 = vector.broadcast %106 : f32 to vector<2x128xf32>
    %108 = arith.addf %105, %107 : vector<2x128xf32>
    %cst_39 = arith.constant 0.000000e+00 : f32
    %109 = vector.broadcast %cst_39 : f32 to vector<2x128xf32>
    %110 = arith.maximumf %108, %109 : vector<2x128xf32>
    %c1_40 = arith.constant 1 : index
    %111 = memref.load %arg7[%c1_40] : memref<2xf32, #tpu.memory_space<smem>>
    %112 = vector.broadcast %111 : f32 to vector<2x128xf32>
    %113 = arith.mulf %110, %112 : vector<2x128xf32>
    %114 = arith.addf %58, %113 : vector<2x128xf32>
    %c0_41 = arith.constant 0 : index
    %115 = memref.load %arg8[%c0_41] : memref<1xf32, #tpu.memory_space<smem>>
    %116 = vector.broadcast %115 : f32 to vector<2x128xf32>
    %117 = arith.addf %114, %116 : vector<2x128xf32>
    %118 = arith.negf %117 : vector<2x128xf32>
    %119 = math.exp %118 : vector<2x128xf32>
    %cst_42 = arith.constant 1.000000e+00 : f32
    %120 = vector.broadcast %cst_42 : f32 to vector<2x128xf32>
    %121 = arith.addf %120, %119 : vector<2x128xf32>
    %122 = arith.divf %120, %121 : vector<2x128xf32>
    %123 = vector.shape_cast %122 : vector<2x128xf32> to vector<1x2x128xf32>
    %124 = vector.broadcast %123 : vector<1x2x128xf32> to vector<4x2x128xf32>
    %125 = arith.mulf %3, %124 : vector<4x2x128xf32>
    %c0_43 = arith.constant 0 : index
    %c0_44 = arith.constant 0 : index
    %c0_45 = arith.constant 0 : index
    %c0_46 = arith.constant 0 : index
    %126 = vector.load %arg9[%c0_43, %c0_44, %c0_45, %c0_46] : memref<1x4x2x128xf32, #tpu.memory_space<vmem>>, vector<1x4x2x128xf32>
    %127 = vector.shape_cast %126 : vector<1x4x2x128xf32> to vector<4x2x128xf32>
    %128 = vector.shape_cast %125 : vector<4x2x128xf32> to vector<1x4x2x128xf32>
    tpu.vector_store %arg9[%c0_43, %c0_44, %c0_45, %c0_46], %128 {strides = array<i32>} : memref<1x4x2x128xf32, #tpu.memory_space<vmem>>, vector<1x4x2x128xf32>,
    return
  }
  func.func @transform_0(%arg0: i32, %arg1: i32) -> (i32, i32, i32, i32) {
    %c0_i32 = arith.constant 0 : i32
    %c0_i32_0 = arith.constant 0 : i32
    %c0_i32_1 = arith.constant 0 : i32
    return %arg0, %c0_i32, %arg1, %c0_i32_0 : i32, i32, i32, i32
  }
  func.func @transform_1(%arg0: i32, %arg1: i32) -> (i32, i32, i32, i32) {
    %c0_i32 = arith.constant 0 : i32
    %c0_i32_0 = arith.constant 0 : i32
    %c0_i32_1 = arith.constant 0 : i32
    return %arg0, %c0_i32, %arg1, %c0_i32_0 : i32, i32, i32, i32
  }
  func.func @transform_2(%arg0: i32, %arg1: i32) -> (i32, i32) {
    %c0_i32 = arith.constant 0 : i32
    %c0_i32_0 = arith.constant 0 : i32
    %c0_i32_1 = arith.constant 0 : i32
    return %c0_i32, %c0_i32_0 : i32, i32
  }
  func.func @transform_3(%arg0: i32, %arg1: i32) -> (i32, i32) {
    %c0_i32 = arith.constant 0 : i32
    %c0_i32_0 = arith.constant 0 : i32
    %c0_i32_1 = arith.constant 0 : i32
    return %c0_i32, %c0_i32_0 : i32, i32
  }
  func.func @transform_4(%arg0: i32, %arg1: i32) -> i32 {
    %c0_i32 = arith.constant 0 : i32
    %c0_i32_0 = arith.constant 0 : i32
    return %c0_i32 : i32
  }
  func.func @transform_5(%arg0: i32, %arg1: i32) -> i32 {
    %c0_i32 = arith.constant 0 : i32
    %c0_i32_0 = arith.constant 0 : i32
    return %c0_i32 : i32
  }
  func.func @transform_6(%arg0: i32, %arg1: i32) -> i32 {
    %c0_i32 = arith.constant 0 : i32
    %c0_i32_0 = arith.constant 0 : i32
    return %c0_i32 : i32
  }
  func.func @transform_7(%arg0: i32, %arg1: i32) -> (i32, i32, i32, i32) {
    %c0_i32 = arith.constant 0 : i32
    %c0_i32_0 = arith.constant 0 : i32
    %c0_i32_1 = arith.constant 0 : i32
    return %arg0, %c0_i32, %arg1, %c0_i32_0 : i32, i32, i32, i32
  }
}

</mosaic_0001>

<llo_original>
// kernel: spatial_attention_forward.1
$region0: #{spatial_attention_forward.1}
  #allocation0 [shape = 'u32[]', space=smem, size = 0x4, offset = 0x4, fixed_abs, tag = 'smem constant byte address 0x4 - core index']
  #allocation1 [shape = 'u32[144,128]{1,0:T(1,128)}', space=vmem, size = 0x12000, scoped, tag = 'internal scratch']
  #allocation2 [shape = 'f32[1]{0:T(128)S(6)}', space=smem, size = 0x200, scoped, tag = 'scoped memory for spatial_attention_forward.1']
  %s0 = inlined_call_operand.vmem [shape: f32[2,4,2,128], index: 0, kind: input, shape index: {}]
  %s1 = inlined_call_operand.vmem [shape: f32[2,4,2,128], index: 1, kind: input, shape index: {}]
  %s2 = inlined_call_operand.vmem [shape: f32[2,4], index: 2, kind: input, shape index: {}]
  %s3 = inlined_call_operand.vmem [shape: f32[2,4], index: 3, kind: input, shape index: {}]
  %s4 = inlined_call_operand.vmem [shape: f32[2], index: 4, kind: input, shape index: {}]
  %s5 = inlined_call_operand.vmem [shape: f32[2], index: 5, kind: input, shape index: {}]
  %s6 = inlined_call_operand.<no memory space> [shape: f32[1], index: 6, kind: input, shape index: {}]
  %s7 = inlined_call_operand.vmem [shape: f32[2,4,2,128], index: 7, kind: output, shape index: {}]
  %s8 = sld [smem:[#allocation0]]
  $region77: #{spatial_attention_forward.1} parent=0
    _
  %s10 = ssub.s32 1, %s8
  %s11 = scalar_select 0, %s10, %s8
  %12 = sst [smem:[#allocation2]] %s6
  $region1: #{spatial_attention_forward.1} parent=0
    #allocation3 [shape = 'u8[1024]{0}', space=smem, size = 0x400, scoped, tag = 'input window, operand 2, single buffered']
    #allocation4 [shape = 's32[2]{0}', space=sflag, size = 0x8, scoped, tag = 'scoped memory for spatial_attention_forward.1']
    #allocation5 [shape = 'u8[1024]{0}', space=smem, size = 0x400, scoped, tag = 'input window, operand 3, single buffered']
    #allocation6 [shape = 's32[1]{0}', space=sflag, size = 0x4, scoped, tag = 'scoped memory for spatial_attention_forward.1']
    #allocation7 [shape = 'u8[512]{0}', space=smem, size = 0x200, scoped, tag = 'input window, operand 4, single buffered']
    #allocation8 [shape = 'u8[512]{0}', space=smem, size = 0x200, scoped, tag = 'input window, operand 5, single buffered']
    #allocation9 [shape = 's32[1]{0}', space=sflag, size = 0x4, scoped, tag = 'scoped memory for spatial_attention_forward.1']
    %13 = vsyncpa [#allocation4], 0
    %14 = vsyncpa [#allocation6], 0
    %15 = vsyncpa [#allocation9], 0
    loop: start=0, step=1, limit=4
    $region2: #{spatial_attention_forward.1} parent=1 // loop_pre_header
      _
    $region3: #{spatial_attention_forward.1} parent=1 // loop_header
      %s17 = sphi 0, %s21
      %p18 = scmp.ge.s32.totalorder %s17, 4
      %s24 = sphi 0, %s36
      %s25 = sphi 0, %s32
      %s26 = sphi 0, %s24
      %s27 = sphi 0, %s25
      %s28 = sphi 0, %s26
      %s29 = sphi 0, %s27
      %s41 = sphi 0, %s43
      %s44 = sphi 0, %s41
      %s45 = sphi 0, %s44
      %s61 = sphi 0, %s45
      %s69 = sphi 0, %s71
      %s72 = sphi 0, %s69
      %s73 = sphi 0, %s72
      %s89 = sphi 0, %s73
      %s93 = sphi 0, %s93
      %s95 = sphi 0, %s93
      %s96 = sphi 0, %s95
      %s110 = sphi 0, %s96
      %s114 = sphi 0, %s114
      %s116 = sphi 0, %s114
      %s117 = sphi 0, %s116
      %s131 = sphi 0, %s117
      %s135 = sphi 0, %s135
      %s137 = sphi 0, %s135
      %s138 = sphi 0, %s137
      %s152 = sphi 0, %s138
      %s156 = sphi 0, %s156
      %s158 = sphi 0, %s156
      %s159 = sphi 0, %s158
      %s173 = sphi 0, %s159
      %s177 = sphi 0, %s177
      %s179 = sphi 0, %s177
      %s180 = sphi 0, %s179
      %s194 = sphi 0, %s180
      %s202 = sphi 0, %s204
      %s205 = sphi 0, %s202
      %s206 = sphi 0, %s205
      %s222 = sphi 0, %s206
    $region4: #{spatial_attention_forward.1} parent=1 // loop_header_branch
      %20 = sbr.rel (%p18) target = $region8
    $region5: #{spatial_attention_forward.1} parent=1 // loop_body
      %s22 = ssub.s32 %s17, 1
      %s23 = ssub.s32 %s17, 2
      %s30 = sadd.s32 1, %s25
      %p31 = scmp.ge.s32.totalorder %s30, 1
      %s32 = scalar_select %p31, 0, %s30
      %s33 = sadd.s32 1, %s24
      %s34 = scalar_select %p31, %s33, %s24
      %p35 = scmp.ge.s32.totalorder %s34, 2
      %s36 = scalar_select %p35, 0, %s34
      %s37 = ssub.s32 %s24, %s36
      %s38 = ssub.s32 %s25, %s32
      %s39 = sor.u32 %s37, %s38
      %p40 = scmp.eq.s32.totalorder %s39, 0
      %s42 = sadd.s32 %s41, 1
      %s43 = scalar_select %p40, %s41, %s42
      %p46 = pneg %p40
      %p47 = scmp.eq.s32.totalorder %s17, 1
      %p48 = por %p46, %p47
      %p49 = scmp.ne.s32.totalorder %s41, %s44
      %p50 = scmp.eq.s32.totalorder %s17, 0
      %p51 = por %p49, %p50
      %p52 = scmp.ne.s32.totalorder %s41, %s44
      %p53 = scmp.eq.s32.totalorder %s22, 1
      %p54 = por %p52, %p53
      %p55 = scmp.ne.s32.totalorder %s44, %s45
      %p56 = scmp.eq.s32.totalorder %s22, 0
      %p57 = por %p55, %p56
      %p58 = scmp.ne.s32.totalorder %s44, %s45
      %p59 = scmp.eq.s32.totalorder %s23, 1
      %p60 = por %p58, %p59
      %p62 = scmp.ne.s32.totalorder %s45, %s61
      %p63 = scmp.eq.s32.totalorder %s23, 0
      %p64 = por %p62, %p63
      %s65 = ssub.s32 %s24, %s36
      %s66 = ssub.s32 %s25, %s32
      %s67 = sor.u32 %s65, %s66
      %p68 = scmp.eq.s32.totalorder %s67, 0
      %s70 = sadd.s32 %s69, 1
      %s71 = scalar_select %p68, %s69, %s70
      %p74 = pneg %p68
      %p75 = scmp.eq.s32.totalorder %s17, 1
      %p76 = por %p74, %p75
      %p77 = scmp.ne.s32.totalorder %s69, %s72
      %p78 = scmp.eq.s32.totalorder %s17, 0
      %p79 = por %p77, %p78
      %p80 = scmp.ne.s32.totalorder %s69, %s72
      %p81 = scmp.eq.s32.totalorder %s22, 1
      %p82 = por %p80, %p81
      %p83 = scmp.ne.s32.totalorder %s72, %s73
      %p84 = scmp.eq.s32.totalorder %s22, 0
      %p85 = por %p83, %p84
      %p86 = scmp.ne.s32.totalorder %s72, %s73
      %p87 = scmp.eq.s32.totalorder %s23, 1
      %p88 = por %p86, %p87
      %p90 = scmp.ne.s32.totalorder %s73, %s89
      %p91 = scmp.eq.s32.totalorder %s23, 0
      %p92 = por %p90, %p91
      %s94 = sadd.s32 %s93, 1
      %p97 = scmp.eq.s32.totalorder %s17, 1
      %p98 = scmp.ne.s32.totalorder %s93, %s95
      %p99 = scmp.eq.s32.totalorder %s17, 0
      %p100 = por %p98, %p99
      %p101 = scmp.ne.s32.totalorder %s93, %s95
      %p102 = scmp.eq.s32.totalorder %s22, 1
      %p103 = por %p101, %p102
      %p104 = scmp.ne.s32.totalorder %s95, %s96
      %p105 = scmp.eq.s32.totalorder %s22, 0
      %p106 = por %p104, %p105
      %p107 = scmp.ne.s32.totalorder %s95, %s96
      %p108 = scmp.eq.s32.totalorder %s23, 1
      %p109 = por %p107, %p108
      %p111 = scmp.ne.s32.totalorder %s96, %s110
      %p112 = scmp.eq.s32.totalorder %s23, 0
      %p113 = por %p111, %p112
      %s115 = sadd.s32 %s114, 1
      %p118 = scmp.eq.s32.totalorder %s17, 1
      %p119 = scmp.ne.s32.totalorder %s114, %s116
      %p120 = scmp.eq.s32.totalorder %s17, 0
      %p121 = por %p119, %p120
      %p122 = scmp.ne.s32.totalorder %s114, %s116
      %p123 = scmp.eq.s32.totalorder %s22, 1
      %p124 = por %p122, %p123
      %p125 = scmp.ne.s32.totalorder %s116, %s117
      %p126 = scmp.eq.s32.totalorder %s22, 0
      %p127 = por %p125, %p126
      %p128 = scmp.ne.s32.totalorder %s116, %s117
      %p129 = scmp.eq.s32.totalorder %s23, 1
      %p130 = por %p128, %p129
      %p132 = scmp.ne.s32.totalorder %s117, %s131
      %p133 = scmp.eq.s32.totalorder %s23, 0
      %p134 = por %p132, %p133
      %s136 = sadd.s32 %s135, 1
      %p139 = scmp.eq.s32.totalorder %s17, 1
      %p140 = scmp.ne.s32.totalorder %s135, %s137
      %p141 = scmp.eq.s32.totalorder %s17, 0
      %p142 = por %p140, %p141
      %p143 = scmp.ne.s32.totalorder %s135, %s137
      %p144 = scmp.eq.s32.totalorder %s22, 1
      %p145 = por %p143, %p144
      %p146 = scmp.ne.s32.totalorder %s137, %s138
      %p147 = scmp.eq.s32.totalorder %s22, 0
      %p148 = por %p146, %p147
      %p149 = scmp.ne.s32.totalorder %s137, %s138
      %p150 = scmp.eq.s32.totalorder %s23, 1
      %p151 = por %p149, %p150
      %p153 = scmp.ne.s32.totalorder %s138, %s152
      %p154 = scmp.eq.s32.totalorder %s23, 0
      %p155 = por %p153, %p154
      %s157 = sadd.s32 %s156, 1
      %p160 = scmp.eq.s32.totalorder %s17, 1
      %p161 = scmp.ne.s32.totalorder %s156, %s158
      %p162 = scmp.eq.s32.totalorder %s17, 0
      %p163 = por %p161, %p162
      %p164 = scmp.ne.s32.totalorder %s156, %s158
      %p165 = scmp.eq.s32.totalorder %s22, 1
      %p166 = por %p164, %p165
      %p167 = scmp.ne.s32.totalorder %s158, %s159
      %p168 = scmp.eq.s32.totalorder %s22, 0
      %p169 = por %p167, %p168
      %p170 = scmp.ne.s32.totalorder %s158, %s159
      %p171 = scmp.eq.s32.totalorder %s23, 1
      %p172 = por %p170, %p171
      %p174 = scmp.ne.s32.totalorder %s159, %s173
      %p175 = scmp.eq.s32.totalorder %s23, 0
      %p176 = por %p174, %p175
      %s178 = sadd.s32 %s177, 1
      %p181 = scmp.eq.s32.totalorder %s17, 1
      %p182 = scmp.ne.s32.totalorder %s177, %s179
      %p183 = scmp.eq.s32.totalorder %s17, 0
      %p184 = por %p182, %p183
      %p185 = scmp.ne.s32.totalorder %s177, %s179
      %p186 = scmp.eq.s32.totalorder %s22, 1
      %p187 = por %p185, %p186
      %p188 = scmp.ne.s32.totalorder %s179, %s180
      %p189 = scmp.eq.s32.totalorder %s22, 0
      %p190 = por %p188, %p189
      %p191 = scmp.ne.s32.totalorder %s179, %s180
      %p192 = scmp.eq.s32.totalorder %s23, 1
      %p193 = por %p191, %p192
      %p195 = scmp.ne.s32.totalorder %s180, %s194
      %p196 = scmp.eq.s32.totalorder %s23, 0
      %p197 = por %p195, %p196
      %s198 = ssub.s32 %s24, %s36
      %s199 = ssub.s32 %s25, %s32
      %s200 = sor.u32 %s198, %s199
      %p201 = scmp.eq.s32.totalorder %s200, 0
      %s203 = sadd.s32 %s202, 1
      %s204 = scalar_select %p201, %s202, %s203
      %p207 = pneg %p201
      %p208 = scmp.eq.s32.totalorder %s17, 1
      %p209 = por %p207, %p208
      %p210 = scmp.ne.s32.totalorder %s202, %s205
      %p211 = scmp.eq.s32.totalorder %s17, 0
      %p212 = por %p210, %p211
      %p213 = scmp.ne.s32.totalorder %s202, %s205
      %p214 = scmp.eq.s32.totalorder %s22, 1
      %p215 = por %p213, %p214
      %p216 = scmp.ne.s32.totalorder %s205, %s206
      %p217 = scmp.eq.s32.totalorder %s22, 0
      %p218 = por %p216, %p217
      %p219 = scmp.ne.s32.totalorder %s205, %s206
      %p220 = scmp.eq.s32.totalorder %s23, 1
      %p221 = por %p219, %p220
      %p223 = scmp.ne.s32.totalorder %s206, %s222
      %p224 = scmp.eq.s32.totalorder %s23, 0
      %p225 = por %p223, %p224
      %p226 = scmp.le.s32.totalorder 1, %s17
      %p227 = scmp.lt.s32.totalorder %s17, 3
      %p228 = pnand %p226, %p227
      %p229 = pneg %p228
      // Predicated region
      $region9: #{spatial_attention_forward.1} parent=5 // pred_check
        _
      $region10: #{spatial_attention_forward.1} parent=5 // pred_check_branch
        %231 = sbr.rel (%p228) target = $region12
      $region11: #{spatial_attention_forward.1} parent=5 // pred_region
        %s232 = ssub.s32 %s17, 1
        // Predicated region
        $region13: #{spatial_attention_forward.1} parent=11 // pred_check
          %p233 = pneg %p106
        $region14: #{spatial_attention_forward.1} parent=11 // pred_check_branch
          %235 = sbr.rel (%p233) target = $region16
        $region15: #{spatial_attention_forward.1} parent=11 // pred_region
          %s237 = ssub.s32 32, 32
          %238 = vsyncadd [#allocation4], %s237
          %s240 = sshll.u32 %s2, 4
          %s241 = int_to_ptr.vmem [resolvable:$true] %s240
          %243 = dma.vmem_to_smem %s241, 32, [#allocation3], [#allocation4]
        $region16: #{spatial_attention_forward.1} parent=11 // pred_fallthru
          _
        // Predicated region
        $region17: #{spatial_attention_forward.1} parent=11 // pred_check
          %p244 = pneg %p127
        $region18: #{spatial_attention_forward.1} parent=11 // pred_check_branch
          %246 = sbr.rel (%p244) target = $region20
        $region19: #{spatial_attention_forward.1} parent=11 // pred_region
          %s248 = ssub.s32 32, 32
          %249 = vsyncadd [#allocation6], %s248
          %s251 = sshll.u32 %s3, 4
          %s252 = int_to_ptr.vmem [resolvable:$true] %s251
          %254 = dma.vmem_to_smem %s252, 32, [#allocation5], [#allocation6]
        $region20: #{spatial_attention_forward.1} parent=11 // pred_fallthru
          _
        // Predicated region
        $region21: #{spatial_attention_forward.1} parent=11 // pred_check
          %p255 = pneg %p148
        $region22: #{spatial_attention_forward.1} parent=11 // pred_check_branch
          %257 = sbr.rel (%p255) target = $region24
        $region23: #{spatial_attention_forward.1} parent=11 // pred_region
          %s259 = ssub.s32 16, 16
          %260 = vsyncadd [#allocation6], %s259
          %s262 = sshll.u32 %s4, 4
          %s263 = int_to_ptr.vmem [resolvable:$true] %s262
          %265 = dma.vmem_to_smem %s263, 16, [#allocation7], [#allocation6]
        $region24: #{spatial_attention_forward.1} parent=11 // pred_fallthru
          _
        // Predicated region
        $region25: #{spatial_attention_forward.1} parent=11 // pred_check
          %p266 = pneg %p169
        $region26: #{spatial_attention_forward.1} parent=11 // pred_check_branch
          %268 = sbr.rel (%p266) target = $region28
        $region27: #{spatial_attention_forward.1} parent=11 // pred_region
          %s270 = ssub.s32 16, 16
          %271 = vsyncadd [#allocation9], %s270
          %s273 = sshll.u32 %s5, 4
          %s274 = int_to_ptr.vmem [resolvable:$true] %s273
          %276 = dma.vmem_to_smem %s274, 16, [#allocation8], [#allocation9]
        $region28: #{spatial_attention_forward.1} parent=11 // pred_fallthru
          _
        // Predicated region
        $region29: #{spatial_attention_forward.1} parent=11 // pred_check
          %p277 = pneg %p190
        $region30: #{spatial_attention_forward.1} parent=11 // pred_check_branch
          %279 = sbr.rel (%p277) target = $region32
        $region31: #{spatial_attention_forward.1} parent=11 // pred_region
          _
        $region32: #{spatial_attention_forward.1} parent=11 // pred_fallthru
          _
      $region12: #{spatial_attention_forward.1} parent=5 // pred_fallthru
        _
      %p280 = scmp.lt.s32.totalorder %s17, 2
      // Predicated region
      $region33: #{spatial_attention_forward.1} parent=5 // pred_check
        %p281 = pneg %p280
      $region34: #{spatial_attention_forward.1} parent=5 // pred_check_branch
        %283 = sbr.rel (%p281) target = $region36
      $region35: #{spatial_attention_forward.1} parent=5 // pred_region
        // Predicated region
        $region37: #{spatial_attention_forward.1} parent=35 // pred_check
          %p284 = pneg %p51
        $region38: #{spatial_attention_forward.1} parent=35 // pred_check_branch
          %286 = sbr.rel (%p284) target = $region40
        $region39: #{spatial_attention_forward.1} parent=35 // pred_region
          %p287 = scmp.lt.s32.totalorder %s24, 1
          %s288 = scalar_select %p287, %s24, 1
          %p289 = scmp.lt.s32.totalorder %s25, 0
          %s290 = scalar_select %p289, %s25, 0
          %s291 = smul.addr %s288, 4
          %s292 = sadd.s32 %s290, %s291
          %s293 = smul.addr %s292, 2
          %s294 = scalar_lea.vmem %s0, %s293
        $region40: #{spatial_attention_forward.1} parent=35 // pred_fallthru
          _
        // Predicated region
        $region41: #{spatial_attention_forward.1} parent=35 // pred_check
          %p295 = pneg %p79
        $region42: #{spatial_attention_forward.1} parent=35 // pred_check_branch
          %297 = sbr.rel (%p295) target = $region44
        $region43: #{spatial_attention_forward.1} parent=35 // pred_region
          %p298 = scmp.lt.s32.totalorder %s24, 1
          %s299 = scalar_select %p298, %s24, 1
          %p300 = scmp.lt.s32.totalorder %s25, 0
          %s301 = scalar_select %p300, %s25, 0
          %s302 = smul.addr %s299, 4
          %s303 = sadd.s32 %s301, %s302
          %s304 = smul.addr %s303, 2
          %s305 = scalar_lea.vmem %s1, %s304
        $region44: #{spatial_attention_forward.1} parent=35 // pred_fallthru
          _
      $region36: #{spatial_attention_forward.1} parent=5 // pred_fallthru
        _
      %p306 = scmp.le.s32.totalorder 1, %s17
      %p307 = scmp.lt.s32.totalorder %s17, 3
      %p308 = pnand %p306, %p307
      %p309 = pneg %p308
      // Predicated region
      $region45: #{spatial_attention_forward.1} parent=5 // pred_check
        _
      $region46: #{spatial_attention_forward.1} parent=5 // pred_check_branch
        %311 = sbr.rel (%p308) target = $region48
      $region47: #{spatial_attention_forward.1} parent=5 // pred_region
        %s312 = ssub.s32 %s17, 1
        // Predicated region
        $region49: #{spatial_attention_forward.1} parent=47 // pred_check
          %p313 = pneg %p106
        $region50: #{spatial_attention_forward.1} parent=47 // pred_check_branch
          %315 = sbr.rel (%p313) target = $region52
        $region51: #{spatial_attention_forward.1} parent=47 // pred_region
          %316 = dma.done [#allocation4], 32
        $region52: #{spatial_attention_forward.1} parent=47 // pred_fallthru
          _
        // Predicated region
        $region53: #{spatial_attention_forward.1} parent=47 // pred_check
          %p317 = pneg %p127
        $region54: #{spatial_attention_forward.1} parent=47 // pred_check_branch
          %319 = sbr.rel (%p317) target = $region56
        $region55: #{spatial_attention_forward.1} parent=47 // pred_region
          %320 = dma.done [#allocation6], 32
        $region56: #{spatial_attention_forward.1} parent=47 // pred_fallthru
          _
        // Predicated region
        $region57: #{spatial_attention_forward.1} parent=47 // pred_check
          %p321 = pneg %p148
        $region58: #{spatial_attention_forward.1} parent=47 // pred_check_branch
          %323 = sbr.rel (%p321) target = $region60
        $region59: #{spatial_attention_forward.1} parent=47 // pred_region
          %324 = dma.done [#allocation6], 16
        $region60: #{spatial_attention_forward.1} parent=47 // pred_fallthru
          _
        // Predicated region
        $region61: #{spatial_attention_forward.1} parent=47 // pred_check
          %p325 = pneg %p169
        $region62: #{spatial_attention_forward.1} parent=47 // pred_check_branch
          %327 = sbr.rel (%p325) target = $region64
        $region63: #{spatial_attention_forward.1} parent=47 // pred_region
          %328 = dma.done [#allocation9], 16
        $region64: #{spatial_attention_forward.1} parent=47 // pred_fallthru
          _
        %329 = sfence
        %p330 = scmp.lt.s32.totalorder %s26, 1
        %s331 = scalar_select %p330, %s26, 1
        %p332 = scmp.lt.s32.totalorder %s27, 0
        %s333 = scalar_select %p332, %s27, 0
        %s334 = smul.addr %s331, 4
        %s335 = sadd.s32 %s333, %s334
        %s336 = smul.addr %s335, 2
        %s337 = scalar_lea.vmem %s0, %s336
        %p338 = pneg %p57
        %p339 = pneg %p54
        %p340 = scmp.lt.s32.totalorder %s26, 1
        %s341 = scalar_select %p340, %s26, 1
        %p342 = scmp.lt.s32.totalorder %s27, 0
        %s343 = scalar_select %p342, %s27, 0
        %s344 = smul.addr %s341, 4
        %s345 = sadd.s32 %s343, %s344
        %s346 = smul.addr %s345, 2
        %s347 = scalar_lea.vmem %s1, %s346
        %p348 = pneg %p85
        %p349 = pneg %p82
        %p350 = pneg %p106
        %p351 = pneg %p103
        %p352 = pneg %p127
        %p353 = pneg %p124
        %p354 = pneg %p148
        %p355 = pneg %p145
        %p356 = pneg %p169
        %p357 = pneg %p166
        %p358 = pneg %p190
        %p359 = pneg %p187
        %p360 = pneg %p218
        %p361 = pneg %p215
        %p362 = scmp.lt.s32.totalorder %s26, 1
        %s363 = scalar_select %p362, %s26, 1
        %p364 = scmp.lt.s32.totalorder %s27, 0
        %s365 = scalar_select %p364, %s27, 0
        %s366 = smul.addr %s363, 4
        %s367 = sadd.s32 %s365, %s366
        %s368 = smul.addr %s367, 2
        %s369 = scalar_lea.vmem %s7, %s368
        %p370 = scmp.lt.s32.totalorder %s26, 1
        %s371 = scalar_select %p370, %s26, 1
        %p372 = scmp.lt.s32.totalorder %s27, 0
        %s373 = scalar_select %p372, %s27, 0
        %s374 = smul.addr %s371, 4
        %s375 = sadd.s32 %s373, %s374
        %s376 = smul.addr %s375, 2
        %s377 = scalar_lea.vmem %s0, %s376
        %p378 = scmp.lt.s32.totalorder %s26, 1
        %s379 = scalar_select %p378, %s26, 1
        %p380 = scmp.lt.s32.totalorder %s27, 0
        %s381 = scalar_select %p380, %s27, 0
        %s382 = smul.addr %s379, 4
        %s383 = sadd.s32 %s381, %s382
        %s384 = smul.addr %s383, 2
        %s385 = scalar_lea.vmem %s1, %s384
        %p386 = scmp.lt.s32.totalorder %s26, 1
        %s387 = scalar_select %p386, %s26, 1
        %p388 = scmp.lt.s32.totalorder %s27, 0
        %s389 = scalar_select %p388, %s27, 0
        %s390 = smul.addr %s387, 4
        %s391 = sadd.s32 %s389, %s390
        %s392 = smul.addr %s391, 2
        %s393 = scalar_lea.vmem %s7, %s392
        %v394 = vld [vmem:[%s377] sm:$0x3]
        %v395 = vld [vmem:[%s377 + $0x2] sm:$0x3]
        %v396 = vld [vmem:[%s377 + $0x4] sm:$0x3]
        %v397 = vld [vmem:[%s377 + $0x6] sm:$0x3]
        %v398 = vld [vmem:[%s385] sm:$0x3]
        %v399 = vld [vmem:[%s385 + $0x2] sm:$0x3]
        %v400 = vld [vmem:[%s385 + $0x4] sm:$0x3]
        %v401 = vld [vmem:[%s385 + $0x6] sm:$0x3]
        %s402 = sld [smem:[#allocation3]]
        %v403 = vstv %s402
        %v404 = vmul.f32 %v394, %v403
        %s405 = sld [smem:[#allocation3 + $0x1]]
        %v406 = vstv %s405
        %v407 = vmul.f32 %v395, %v406
        %v408 = vadd.f32 %v404, %v407
        %s409 = sld [smem:[#allocation3 + $0x2]]
        %v410 = vstv %s409
        %v411 = vmul.f32 %v396, %v410
        %v412 = vadd.f32 %v408, %v411
        %s413 = sld [smem:[#allocation3 + $0x3]]
        %v414 = vstv %s413
        %v415 = vmul.f32 %v397, %v414
        %v416 = vadd.f32 %v412, %v415
        %s417 = sld [smem:[#allocation5]]
        %v418 = vstv %s417
        %v419 = vmul.f32 %v398, %v418
        %v420 = vadd.f32 %v416, %v419
        %s421 = sld [smem:[#allocation5 + $0x1]]
        %v422 = vstv %s421
        %v423 = vmul.f32 %v399, %v422
        %v424 = vadd.f32 %v420, %v423
        %s425 = sld [smem:[#allocation5 + $0x2]]
        %v426 = vstv %s425
        %v427 = vmul.f32 %v400, %v426
        %v428 = vadd.f32 %v424, %v427
        %s429 = sld [smem:[#allocation5 + $0x3]]
        %v430 = vstv %s429
        %v431 = vmul.f32 %v401, %v430
        %v432 = vadd.f32 %v428, %v431
        %s433 = sld [smem:[#allocation7]]
        %v434 = vstv %s433
        %v435 = vadd.f32 %v432, %v434
        %v436 = vmax.f32 %v435, 0.0
        %s437 = sld [smem:[#allocation8]]
        %v438 = vstv %s437
        %v439 = vmul.f32 %v436, %v438
        %s440 = sld [smem:[#allocation3 + $0x80]]
        %v441 = vstv %s440
        %v442 = vmul.f32 %v394, %v441
        %s443 = sld [smem:[#allocation3 + $0x81]]
        %v444 = vstv %s443
        %v445 = vmul.f32 %v395, %v444
        %v446 = vadd.f32 %v442, %v445
        %s447 = sld [smem:[#allocation3 + $0x82]]
        %v448 = vstv %s447
        %v449 = vmul.f32 %v396, %v448
        %v450 = vadd.f32 %v446, %v449
        %s451 = sld [smem:[#allocation3 + $0x83]]
        %v452 = vstv %s451
        %v453 = vmul.f32 %v397, %v452
        %v454 = vadd.f32 %v450, %v453
        %s455 = sld [smem:[#allocation5 + $0x80]]
        %v456 = vstv %s455
        %v457 = vmul.f32 %v398, %v456
        %v458 = vadd.f32 %v454, %v457
        %s459 = sld [smem:[#allocation5 + $0x81]]
        %v460 = vstv %s459
        %v461 = vmul.f32 %v399, %v460
        %v462 = vadd.f32 %v458, %v461
        %s463 = sld [smem:[#allocation5 + $0x82]]
        %v464 = vstv %s463
        %v465 = vmul.f32 %v400, %v464
        %v466 = vadd.f32 %v462, %v465
        %s467 = sld [smem:[#allocation5 + $0x83]]
        %v468 = vstv %s467
        %v469 = vmul.f32 %v401, %v468
        %v470 = vadd.f32 %v466, %v469
        %s471 = sld [smem:[#allocation7 + $0x1]]
        %v472 = vstv %s471
        %v473 = vadd.f32 %v470, %v472
        %v474 = vmax.f32 %v473, 0.0
        %s475 = sld [smem:[#allocation8 + $0x1]]
        %v476 = vstv %s475
        %v477 = vmul.f32 %v474, %v476
        %v478 = vadd.f32 %v439, %v477
        %s479 = sld [smem:[#allocation2]]
        %v480 = vstv %s479
        %v481 = vadd.f32 %v478, %v480
        %v482 = vxor.u32 %v481, 2147483648
        %v483 = vmul.f32 %v482, 1.442695
        %v484 = vpow.pop %v483
        %v485 = vadd.f32 %v484, 1.0
        %v486 = vrcp.pop %v485
        %v487 = vmul.f32 1.0, %v486
        %v488 = vmul.f32 %v398, %v487
        %v489 = vmul.f32 %v399, %v487
        %v490 = vmul.f32 %v400, %v487
        %v491 = vmul.f32 %v401, %v487
        %492 = vst [vmem:[%s393] sm:$0x3] %v488
        %493 = vst [vmem:[%s393 + $0x2] sm:$0x3] %v489
        %494 = vst [vmem:[%s393 + $0x4] sm:$0x3] %v490
        %495 = vst [vmem:[%s393 + $0x6] sm:$0x3] %v491
        %p496 = scmp.lt.s32.totalorder %s26, 1
        %s497 = scalar_select %p496, %s26, 1
        %p498 = scmp.lt.s32.totalorder %s27, 0
        %s499 = scalar_select %p498, %s27, 0
        %s500 = smul.addr %s497, 4
        %s501 = sadd.s32 %s499, %s500
        %s502 = smul.addr %s501, 2
        %s503 = scalar_lea.vmem %s7, %s502
        // Predicated region
        $region65: #{spatial_attention_forward.1} parent=47 // pred_check
          %p504 = pneg %p215
        $region66: #{spatial_attention_forward.1} parent=47 // pred_check_branch
          %506 = sbr.rel (%p504) target = $region68
        $region67: #{spatial_attention_forward.1} parent=47 // pred_region
          _
        $region68: #{spatial_attention_forward.1} parent=47 // pred_fallthru
          _
      $region48: #{spatial_attention_forward.1} parent=5 // pred_fallthru
        _
      %p507 = scmp.le.s32.totalorder 2, %s17
      // Predicated region
      $region69: #{spatial_attention_forward.1} parent=5 // pred_check
        %p508 = pneg %p507
      $region70: #{spatial_attention_forward.1} parent=5 // pred_check_branch
        %510 = sbr.rel (%p508) target = $region72
      $region71: #{spatial_attention_forward.1} parent=5 // pred_region
        %s511 = ssub.s32 %s17, 2
        // Predicated region
        $region73: #{spatial_attention_forward.1} parent=71 // pred_check
          %p512 = pneg %p221
        $region74: #{spatial_attention_forward.1} parent=71 // pred_check_branch
          %514 = sbr.rel (%p512) target = $region76
        $region75: #{spatial_attention_forward.1} parent=71 // pred_region
          %p515 = scmp.lt.s32.totalorder %s28, 1
          %s516 = scalar_select %p515, %s28, 1
          %p517 = scmp.lt.s32.totalorder %s29, 0
          %s518 = scalar_select %p517, %s29, 0
          %s519 = smul.addr %s516, 4
          %s520 = sadd.s32 %s518, %s519
          %s521 = smul.addr %s520, 2
          %s522 = scalar_lea.vmem %s7, %s521
        $region76: #{spatial_attention_forward.1} parent=71 // pred_fallthru
          _
      $region72: #{spatial_attention_forward.1} parent=5 // pred_fallthru
        _
    $region6: #{spatial_attention_forward.1} parent=1 // loop_footer
      %s21 = sadd.s32 1, %s17
    $region7: #{spatial_attention_forward.1} parent=1 // loop_footer_branch
      %16 = sbr.rel target = $region3
    $region8: #{spatial_attention_forward.1} parent=1 // loop_exit
      _
    %523 = vsyncpa [#allocation4], 1
    %s524 = scalar_lea.sflag [#allocation4], 1
    %525 = vsyncpa %s524, 1
    %526 = vsyncpa [#allocation6], 1
    %527 = vsyncpa [#allocation9], 1

</llo_original>
